<compile_context>
chip_gen: v6e
topology: v6e:2x2x1
jax: 0.10.0
libtpu: 0.0.40
codegen_flags: <defaults>
</compile_context>

<pallas_src>
import functools
from typing import List, Tuple

import jax
import jax.numpy as jnp
from jax.experimental import pallas as pl
from jax.experimental.pallas import tpu as pltpu

LAMBDA_COORD = 5.0
LAMBDA_NOOBJ = 0.5


def _yolo_loss_kernel(pred_ref, tgt_ref, out_ref, *,
                      sqrt_anchor_w, sqrt_anchor_h, num_ch, valid_s2):
    # Blocks arrive in the native (Bt, Ct, S*S) layout: channels on the sublane
    # axis, flattened grid cells on the lane axis.  Everything is computed with
    # whole-tile ops + per-sublane channel masks, so no HBM relayout is needed.
    p = pred_ref[...].astype(jnp.float32)          # (Bt, Ct, S2)
    t = tgt_ref[...].astype(jnp.float32)

    ch = jax.lax.broadcasted_iota(jnp.int32, p.shape, 1)    # channel id (sublane)
    lane = jax.lax.broadcasted_iota(jnp.int32, p.shape, 2)  # cell id (lane)
    is_wh = (ch == 2) | (ch == 3)

    # Objectness (channel 4 of target); broadcast over channels by jnp.where.
    obj = t[:, 4:5, :]                                       # (Bt, 1, S2)

    # Transformed prediction:
    #   wh channels : sqrt(anchor * exp(tw)) == sqrt(anchor) * exp(0.5*tw)
    #   all others  : sigmoid(p) == 0.5*tanh(0.5*p)+0.5   (1 EUP op, no overflow)
    anchor = jnp.where(ch == 2, sqrt_anchor_w, sqrt_anchor_h)
    fpred = jnp.where(is_wh, anchor * jnp.exp(0.5 * p),
                      0.5 * jnp.tanh(0.5 * p) + 0.5)
    # Transformed target: sqrt for wh channels, identity otherwise.
    ftgt = jnp.where(is_wh, jnp.sqrt(t), t)
    diff2 = (fpred - ftgt) ** 2

    # Object cells:  lambda_coord * diff2 for ch<4,  diff2 for conf/class chans.
    obj_branch = jnp.where(ch < 4, LAMBDA_COORD, 1.0) * diff2
    # No-object cells: lambda_noobj * conf^2 (conf channel only).  fpred at the
    # conf channel is the sigmoid, so it is reused here.  Select (not multiply)
    # so inf from exp on other channels can never turn into 0*inf -> NaN.
    noobj_branch = jnp.where(ch == 4, LAMBDA_NOOBJ * fpred * fpred, 0.0)

    contrib = jnp.where(obj > 0.0, obj_branch, noobj_branch)

    # Zero any vreg padding (lane pad when S*S % 128 != 0, sublane pad when
    # Ct % 8 != 0) before the reduction.
    contrib = jnp.where((ch < num_ch) & (lane < valid_s2), contrib, 0.0)

    total = jnp.sum(contrib)
    # Lane-dense, always-legal (1,8,128) output block; partial sum replicated.
    out_ref[...] = jnp.broadcast_to(total, (1, 8, 128)).astype(out_ref.dtype)


def _round_up(x, m):
    return (x + m - 1) // m * m


def _choose_batch_tile(batch, item_vmem_bytes, budget_bytes):
    # Batch tile must divide B (leading block dim has no (8,128) constraint).
    # Cap at B//2 so the "parallel" grid axis has >=2 steps (v7x megacore);
    # the extra grid step costs ~0.35us on 1-TC chips, which is negligible.
    divisors = [d for d in range(1, batch + 1) if batch % d == 0]
    cap = max(1, batch // 2)
    fitting = [d for d in divisors
               if d <= cap and d * item_vmem_bytes <= budget_bytes]
    if fitting:
        return max(fitting)
    return 1


@functools.partial(jax.jit,
                   static_argnames=("anchor_w", "anchor_h", "block_budget_bytes"))
def yolo_loss_forward(pred, target, *, anchor_w, anchor_h,
                      block_budget_bytes=3 << 20):
    # pred, target: NCHW (B, 5+C, S, S), native layout.
    B, Ct, H, W = pred.shape
    s2 = H * W

    # Free reshape (merges the two minor dims).  No transpose / pad / cast is
    # materialized in HBM -- the kernel consumes the native layout directly.
    pred3 = pred.reshape(B, Ct, s2)
    tgt3 = target.reshape(B, Ct, s2)

    itemsize = jnp.dtype(pred.dtype).itemsize
    # VMEM footprint of one batch item's slab (sublane/lane padded).
    item_vmem = _round_up(Ct, 8) * _round_up(s2, 128) * itemsize
    bt = _choose_batch_tile(B, item_vmem, block_budget_bytes)
    num_tiles = B // bt
    block_bytes = bt * item_vmem
    # ~2 inputs x 2 pipeline buffers + elementwise temporaries; keep under
    # v7x's 64 MiB while explicitly raising v5e's 16 MiB / v6e's 32 MiB default.
    vmem_limit = int(min(56 << 20, max(32 << 20, 12 * block_bytes + (8 << 20))))

    kernel = functools.partial(
        _yolo_loss_kernel,
        sqrt_anchor_w=float(anchor_w) ** 0.5,
        sqrt_anchor_h=float(anchor_h) ** 0.5,
        num_ch=Ct, valid_s2=s2)

    cost = pl.CostEstimate(
        flops=B * Ct * s2 * 12,
        transcendentals=B * Ct * s2 * 3,
        bytes_accessed=2 * B * Ct * s2 * itemsize + num_tiles * 8 * 128 * 4)

    partials = pl.pallas_call(
        kernel,
        out_shape=jax.ShapeDtypeStruct((num_tiles, 8, 128), jnp.float32),
        grid_spec=pltpu.PrefetchScalarGridSpec(
            num_scalar_prefetch=0,
            grid=(num_tiles,),
            in_specs=[
                pl.BlockSpec((bt, Ct, s2), lambda i: (i, 0, 0)),
                pl.BlockSpec((bt, Ct, s2), lambda i: (i, 0, 0)),
            ],
            out_specs=pl.BlockSpec((1, 8, 128), lambda i: (i, 0, 0)),
        ),
        compiler_params=pltpu.CompilerParams(
            dimension_semantics=("parallel",),
            vmem_limit_bytes=vmem_limit),
        cost_estimate=cost,
    )(pred3, tgt3)

    # Each tile's partial sum is replicated over its (8,128) block.
    return jnp.sum(partials[:, 0, 0])


class YOLOLoss:
    """Single-anchor YOLOv2-style loss, hot path in a Pallas TPU kernel."""

    def __init__(self, anchor_box):
        # anchor_box: (2,) array, already scaled to grid units.
        self.anchor_w = float(anchor_box[0])
        self.anchor_h = float(anchor_box[1])

    def __call__(self, pred, target):
        return yolo_loss_forward(pred, target,
                                 anchor_w=self.anchor_w,
                                 anchor_h=self.anchor_h)


class YOLOv2Loss:
    """JAX/Pallas port of the PyTorch YOLOv2Loss module."""

    def __init__(self, anchor_boxes: List[Tuple[int, int]],
                 image_size: int = 416, grid_size: int = 13):
        self.anchor_boxes = jnp.asarray(anchor_boxes, dtype=jnp.float32)
        stride = image_size / grid_size
        self.loss = YOLOLoss(self.anchor_boxes[0] / stride)

    def __call__(self, pred, target):
        return self.loss(pred, target)


def _reference_loss(pred, target, anchor_w, anchor_h):
    """Pure-JAX reference (same math, different op order) for validation."""
    p = pred.astype(jnp.float32)
    t = target.astype(jnp.float32)
    sig = jax.nn.sigmoid
    px, py = sig(p[:, 0]), sig(p[:, 1])
    sqrt_pw = jnp.sqrt(anchor_w) * jnp.exp(0.5 * p[:, 2])
    sqrt_ph = jnp.sqrt(anchor_h) * jnp.exp(0.5 * p[:, 3])
    pconf = sig(p[:, 4])
    pcls = sig(p[:, 5:])
    obj = t[:, 4]
    coord = ((px - t[:, 0]) ** 2 + (py - t[:, 1]) ** 2
             + (sqrt_pw - jnp.sqrt(t[:, 2])) ** 2
             + (sqrt_ph - jnp.sqrt(t[:, 3])) ** 2)
    coord = jnp.where(obj > 0, coord, 0.0)
    conf = jnp.where(obj > 0, (pconf - 1.0) ** 2, LAMBDA_NOOBJ * pconf ** 2)
    cls = jnp.where(obj > 0, jnp.sum((pcls - t[:, 5:]) ** 2, axis=1), 0.0)
    return jnp.sum(LAMBDA_COORD * coord + conf + cls)


def _make_inputs(key, batch, num_classes, grid):
    ct = 5 + num_classes
    k1, k2, k3, k4, k5 = jax.random.split(key, 5)
    pred = jax.random.normal(k1, (batch, ct, grid, grid), dtype=jnp.float32)

    obj = (jax.random.uniform(k2, (batch, 1, grid, grid)) < 0.15).astype(jnp.float32)
    gxy = jax.random.uniform(k3, (batch, 2, grid, grid))                 # in-cell offsets
    gwh = jax.random.uniform(k4, (batch, 2, grid, grid), minval=0.5, maxval=4.0)
    cls_idx = jax.random.randint(k5, (batch, grid, grid), 0, num_classes)
    one_hot = jax.nn.one_hot(cls_idx, num_classes, dtype=jnp.float32)    # (B,S,S,C)
    one_hot = jnp.transpose(one_hot, (0, 3, 1, 2))                       # (B,C,S,S)
    # zero out box/class targets where there is no object (masked anyway)
    target = jnp.concatenate([gxy * obj, gwh * obj, obj, one_hot * obj], axis=1)
    return pred, target


if __name__ == "__main__":
    # Real YOLOv2 defaults at small batch: grid=13 -> 169 flattened cells
    # (exercises the unaligned-lane path with no HBM padding); 5+3=8 channels.
    batch, num_classes, grid = 2, 3, 13
    anchors = [(116, 90), (156, 198), (373, 326)]

    loss_mod = YOLOv2Loss(anchors, image_size=416, grid_size=grid)

    pred, target = _make_inputs(jax.random.PRNGKey(0), batch, num_classes, grid)
    loss = loss_mod(pred, target)
    jax.block_until_ready(loss)

    stride = 416.0 / grid
    ref = _reference_loss(pred, target, anchors[0][0] / stride, anchors[0][1] / stride)
    assert bool(jnp.isfinite(loss)), loss
    assert jnp.allclose(loss, ref, rtol=1e-4, atol=1e-2), (loss, ref)
    print("KERNEL_OK")
</pallas_src>

<mosaic_0001>
module attributes {stable_mosaic.version = 11 : i64} {
  func.func @_yolo_loss_kernel(%arg0: i32, %arg1: memref<1x8x169xf32, #tpu.memory_space<vmem>>, %arg2: memref<1x8x169xf32, #tpu.memory_space<vmem>>, %arg3: memref<1x8x128xf32, #tpu.memory_space<vmem>>) attributes {dimension_semantics = [#tpu.dimension_semantics<parallel>], iteration_bounds = array<i64: 2>, scalar_prefetch = 0 : i64, scratch_operands = 0 : i64, tpu.core_type = #tpu.core_type<tc>, window_params = [{transform_indices = @transform_0, window_bounds = array<i64: 1, 8, 169>}, {transform_indices = @transform_1, window_bounds = array<i64: 1, 8, 169>}, {transform_indices = @transform_2, window_bounds = array<i64: 1, 8, 128>}]} {
    %c0 = arith.constant 0 : index
    %c0_0 = arith.constant 0 : index
    %c0_1 = arith.constant 0 : index
    %0 = vector.load %arg1[%c0, %c0_0, %c0_1] : memref<1x8x169xf32, #tpu.memory_space<vmem>>, vector<1x8x169xf32>
    %c0_2 = arith.constant 0 : index
    %c0_3 = arith.constant 0 : index
    %c0_4 = arith.constant 0 : index
    %1 = vector.load %arg2[%c0_2, %c0_3, %c0_4] : memref<1x8x169xf32, #tpu.memory_space<vmem>>, vector<1x8x169xf32>
    %2 = tpu.iota {dimensions = array<i32: 1>} : vector<1x8x169xi32>
    %3 = tpu.iota {dimensions = array<i32: 2>} : vector<1x8x169xi32>
    %c2_i32 = arith.constant 2 : i32
    %4 = vector.broadcast %c2_i32 : i32 to vector<1x8x169xi32>
    %5 = arith.cmpi eq, %2, %4 : vector<1x8x169xi32>
    %c3_i32 = arith.constant 3 : i32
    %6 = vector.broadcast %c3_i32 : i32 to vector<1x8x169xi32>
    %7 = arith.cmpi eq, %2, %6 : vector<1x8x169xi32>
    %8 = arith.ori %5, %7 : vector<1x8x169xi1>
    %9 = vector.extract_strided_slice %1 {offsets = [0, 4, 0], sizes = [1, 1, 169], strides = [1, 1, 1]} : vector<1x8x169xf32> to vector<1x1x169xf32>
    %c2_i32_5 = arith.constant 2 : i32
    %10 = vector.broadcast %c2_i32_5 : i32 to vector<1x8x169xi32>
    %11 = arith.cmpi eq, %2, %10 : vector<1x8x169xi32>
    %cst = arith.constant 1.9039433 : f32
    %cst_6 = arith.constant 1.67705095 : f32
    %12 = vector.broadcast %cst : f32 to vector<1x8x169xf32>
    %13 = vector.broadcast %cst_6 : f32 to vector<1x8x169xf32>
    %14 = arith.select %11, %12, %13 : vector<1x8x169xi1>, vector<1x8x169xf32>
    %cst_7 = arith.constant 5.000000e-01 : f32
    %15 = vector.broadcast %cst_7 : f32 to vector<1x8x169xf32>
    %16 = arith.mulf %15, %0 : vector<1x8x169xf32>
    %17 = math.exp %16 : vector<1x8x169xf32>
    %18 = arith.mulf %14, %17 : vector<1x8x169xf32>
    %cst_8 = arith.constant 5.000000e-01 : f32
    %19 = vector.broadcast %cst_8 : f32 to vector<1x8x169xf32>
    %20 = arith.mulf %19, %0 : vector<1x8x169xf32>
    %21 = math.tanh %20 : vector<1x8x169xf32>
    %cst_9 = arith.constant 5.000000e-01 : f32
    %22 = vector.broadcast %cst_9 : f32 to vector<1x8x169xf32>
    %23 = arith.mulf %22, %21 : vector<1x8x169xf32>
    %cst_10 = arith.constant 5.000000e-01 : f32
    %24 = vector.broadcast %cst_10 : f32 to vector<1x8x169xf32>
    %25 = arith.addf %23, %24 : vector<1x8x169xf32>
    %26 = arith.select %8, %18, %25 : vector<1x8x169xi1>, vector<1x8x169xf32>
    %27 = math.sqrt %1 : vector<1x8x169xf32>
    %28 = arith.select %8, %27, %1 : vector<1x8x169xi1>, vector<1x8x169xf32>
    %29 = arith.subf %26, %28 : vector<1x8x169xf32>
    %30 = arith.mulf %29, %29 : vector<1x8x169xf32>
    %c4_i32 = arith.constant 4 : i32
    %31 = vector.broadcast %c4_i32 : i32 to vector<1x8x169xi32>
    %32 = arith.cmpi slt, %2, %31 : vector<1x8x169xi32>
    %cst_11 = arith.constant 5.000000e+00 : f32
    %cst_12 = arith.constant 1.000000e+00 : f32
    %33 = vector.broadcast %cst_11 : f32 to vector<1x8x169xf32>
    %34 = vector.broadcast %cst_12 : f32 to vector<1x8x169xf32>
    %35 = arith.select %32, %33, %34 : vector<1x8x169xi1>, vector<1x8x169xf32>
    %36 = arith.mulf %35, %30 : vector<1x8x169xf32>
    %c4_i32_13 = arith.constant 4 : i32
    %37 = vector.broadcast %c4_i32_13 : i32 to vector<1x8x169xi32>
    %38 = arith.cmpi eq, %2, %37 : vector<1x8x169xi32>
    %cst_14 = arith.constant 5.000000e-01 : f32
    %39 = vector.broadcast %cst_14 : f32 to vector<1x8x169xf32>
    %40 = arith.mulf %39, %26 : vector<1x8x169xf32>
    %41 = arith.mulf %40, %26 : vector<1x8x169xf32>
    %cst_15 = arith.constant 0.000000e+00 : f32
    %42 = vector.broadcast %cst_15 : f32 to vector<1x8x169xf32>
    %43 = arith.select %38, %41, %42 : vector<1x8x169xi1>, vector<1x8x169xf32>
    %cst_16 = arith.constant 0.000000e+00 : f32
    %44 = vector.broadcast %cst_16 : f32 to vector<1x1x169xf32>
    %45 = arith.cmpf ogt, %9, %44 : vector<1x1x169xf32>
    %46 = vector.shape_cast %45 : vector<1x1x169xi1> to vector<1x1x169xi1>
    %47 = vector.broadcast %46 : vector<1x1x169xi1> to vector<1x8x169xi1>
    %48 = arith.select %47, %36, %43 : vector<1x8x169xi1>, vector<1x8x169xf32>
    %c8_i32 = arith.constant 8 : i32
    %49 = vector.broadcast %c8_i32 : i32 to vector<1x8x169xi32>
    %50 = arith.cmpi slt, %2, %49 : vector<1x8x169xi32>
    %c169_i32 = arith.constant 169 : i32
    %51 = vector.broadcast %c169_i32 : i32 to vector<1x8x169xi32>
    %52 = arith.cmpi slt, %3, %51 : vector<1x8x169xi32>
    %53 = arith.andi %50, %52 : vector<1x8x169xi1>
    %cst_17 = arith.constant 0.000000e+00 : f32
    %54 = vector.broadcast %cst_17 : f32 to vector<1x8x169xf32>
    %55 = arith.select %53, %48, %54 : vector<1x8x169xi1>, vector<1x8x169xf32>
    %56 = vector.shape_cast %55 : vector<1x8x169xf32> to vector<1x1x8x169xf32>
    %cst_18 = arith.constant dense<0.000000e+00> : vector<1xf32>
    %57 = vector.multi_reduction <add>, %56, %cst_18 [1, 2, 3] : vector<1x1x8x169xf32> to vector<1xf32>
    %58 = vector.shape_cast %57 : vector<1xf32> to vector<1x1x1x1xf32>
    %59 = vector.extract %58[0, 0, 0, 0] : f32 from vector<1x1x1x1xf32>
    %60 = vector.broadcast %59 : f32 to vector<1x8x128xf32>
    %c0_19 = arith.constant 0 : index
    %c0_20 = arith.constant 0 : index
    %c0_21 = arith.constant 0 : index
    %61 = vector.load %arg3[%c0_19, %c0_20, %c0_21] : memref<1x8x128xf32, #tpu.memory_space<vmem>>, vector<1x8x128xf32>
    tpu.vector_store %arg3[%c0_19, %c0_20, %c0_21], %60 {strides = array<i32>} : memref<1x8x128xf32, #tpu.memory_space<vmem>>, vector<1x8x128xf32>,
    return
  }
  func.func @transform_0(%arg0: i32) -> (i32, i32, i32) {
    %c0_i32 = arith.constant 0 : i32
    %c0_i32_0 = arith.constant 0 : i32
    %c0_i32_1 = arith.constant 0 : i32
    return %arg0, %c0_i32, %c0_i32_0 : i32, i32, i32
  }
  func.func @transform_1(%arg0: i32) -> (i32, i32, i32) {
    %c0_i32 = arith.constant 0 : i32
    %c0_i32_0 = arith.constant 0 : i32
    %c0_i32_1 = arith.constant 0 : i32
    return %arg0, %c0_i32, %c0_i32_0 : i32, i32, i32
  }
  func.func @transform_2(%arg0: i32) -> (i32, i32, i32) {
    %c0_i32 = arith.constant 0 : i32
    %c0_i32_0 = arith.constant 0 : i32
    %c0_i32_1 = arith.constant 0 : i32
    return %arg0, %c0_i32, %c0_i32_0 : i32, i32, i32
  }
}

</mosaic_0001>

<llo_original>
// kernel: yolo_loss_forward.1
$region0: #{yolo_loss_forward.1}
  #allocation0 [shape = 'u32[]', space=smem, size = 0x4, offset = 0x4, fixed_abs, tag = 'smem constant byte address 0x4 - core index']
  #allocation1 [shape = 'u32[144,128]{1,0:T(1,128)}', space=vmem, size = 0x12000, scoped, tag = 'internal scratch']
  %s0 = inlined_call_operand.vmem [shape: f32[2,8,169], index: 0, kind: input, shape index: {}]
  %s1 = inlined_call_operand.vmem [shape: f32[2,8,169], index: 1, kind: input, shape index: {}]
  %s2 = inlined_call_operand.vmem [shape: f32[2,8,128], index: 2, kind: output, shape index: {}]
  %s3 = sld [smem:[#allocation0]]
  $region41: #{yolo_loss_forward.1} parent=0
    _
  %s5 = ssub.s32 1, %s3
  %s6 = scalar_select 0, %s5, %s3
  loop: start=0, step=1, limit=4
  $region2: #{yolo_loss_forward.1} parent=0 // loop_pre_header
    _
  $region3: #{yolo_loss_forward.1} parent=0 // loop_header
    %s8 = sphi 0, %s12
    %p9 = scmp.ge.s32.totalorder %s8, 4
    %s18 = sphi 0, %s20
    %s21 = sphi 0, %s18
    %s22 = sphi 0, %s21
    %s38 = sphi 0, %s22
    %s44 = sphi 0, %s46
    %s47 = sphi 0, %s44
    %s48 = sphi 0, %s47
    %s64 = sphi 0, %s48
    %s70 = sphi 0, %s72
    %s73 = sphi 0, %s70
    %s74 = sphi 0, %s73
    %s90 = sphi 0, %s74
  $region4: #{yolo_loss_forward.1} parent=0 // loop_header_branch
    %11 = sbr.rel (%p9) target = $region8
  $region5: #{yolo_loss_forward.1} parent=0 // loop_body
    %s13 = ssub.s32 %s8, 1
    %s14 = ssub.s32 %s8, 2
    %s15 = sadd.s32 %s8, 1
    %s16 = ssub.s32 %s8, %s15
    %p17 = scmp.eq.s32.totalorder %s16, 0
    %s19 = sadd.s32 %s18, 1
    %s20 = scalar_select %p17, %s18, %s19
    %p23 = pneg %p17
    %p24 = scmp.eq.s32.totalorder %s8, 1
    %p25 = por %p23, %p24
    %p26 = scmp.ne.s32.totalorder %s18, %s21
    %p27 = scmp.eq.s32.totalorder %s8, 0
    %p28 = por %p26, %p27
    %p29 = scmp.ne.s32.totalorder %s18, %s21
    %p30 = scmp.eq.s32.totalorder %s13, 1
    %p31 = por %p29, %p30
    %p32 = scmp.ne.s32.totalorder %s21, %s22
    %p33 = scmp.eq.s32.totalorder %s13, 0
    %p34 = por %p32, %p33
    %p35 = scmp.ne.s32.totalorder %s21, %s22
    %p36 = scmp.eq.s32.totalorder %s14, 1
    %p37 = por %p35, %p36
    %p39 = scmp.ne.s32.totalorder %s22, %s38
    %p40 = scmp.eq.s32.totalorder %s14, 0
    %p41 = por %p39, %p40
    %s42 = ssub.s32 %s8, %s15
    %p43 = scmp.eq.s32.totalorder %s42, 0
    %s45 = sadd.s32 %s44, 1
    %s46 = scalar_select %p43, %s44, %s45
    %p49 = pneg %p43
    %p50 = scmp.eq.s32.totalorder %s8, 1
    %p51 = por %p49, %p50
    %p52 = scmp.ne.s32.totalorder %s44, %s47
    %p53 = scmp.eq.s32.totalorder %s8, 0
    %p54 = por %p52, %p53
    %p55 = scmp.ne.s32.totalorder %s44, %s47
    %p56 = scmp.eq.s32.totalorder %s13, 1
    %p57 = por %p55, %p56
    %p58 = scmp.ne.s32.totalorder %s47, %s48
    %p59 = scmp.eq.s32.totalorder %s13, 0
    %p60 = por %p58, %p59
    %p61 = scmp.ne.s32.totalorder %s47, %s48
    %p62 = scmp.eq.s32.totalorder %s14, 1
    %p63 = por %p61, %p62
    %p65 = scmp.ne.s32.totalorder %s48, %s64
    %p66 = scmp.eq.s32.totalorder %s14, 0
    %p67 = por %p65, %p66
    %s68 = ssub.s32 %s8, %s15
    %p69 = scmp.eq.s32.totalorder %s68, 0
    %s71 = sadd.s32 %s70, 1
    %s72 = scalar_select %p69, %s70, %s71
    %p75 = pneg %p69
    %p76 = scmp.eq.s32.totalorder %s8, 1
    %p77 = por %p75, %p76
    %p78 = scmp.ne.s32.totalorder %s70, %s73
    %p79 = scmp.eq.s32.totalorder %s8, 0
    %p80 = por %p78, %p79
    %p81 = scmp.ne.s32.totalorder %s70, %s73
    %p82 = scmp.eq.s32.totalorder %s13, 1
    %p83 = por %p81, %p82
    %p84 = scmp.ne.s32.totalorder %s73, %s74
    %p85 = scmp.eq.s32.totalorder %s13, 0
    %p86 = por %p84, %p85
    %p87 = scmp.ne.s32.totalorder %s73, %s74
    %p88 = scmp.eq.s32.totalorder %s14, 1
    %p89 = por %p87, %p88
    %p91 = scmp.ne.s32.totalorder %s74, %s90
    %p92 = scmp.eq.s32.totalorder %s14, 0
    %p93 = por %p91, %p92
    %p94 = scmp.le.s32.totalorder 1, %s8
    %p95 = scmp.lt.s32.totalorder %s8, 3
    %p96 = pnand %p94, %p95
    %p97 = pneg %p96
    // Predicated region
    $region9: #{yolo_loss_forward.1} parent=5 // pred_check
      _
    $region10: #{yolo_loss_forward.1} parent=5 // pred_check_branch
      %99 = sbr.rel (%p96) target = $region12
    $region11: #{yolo_loss_forward.1} parent=5 // pred_region
      %s100 = ssub.s32 %s8, 1
    $region12: #{yolo_loss_forward.1} parent=5 // pred_fallthru
      _
    %p101 = scmp.lt.s32.totalorder %s8, 2
    // Predicated region
    $region13: #{yolo_loss_forward.1} parent=5 // pred_check
      %p102 = pneg %p101
    $region14: #{yolo_loss_forward.1} parent=5 // pred_check_branch
      %104 = sbr.rel (%p102) target = $region16
    $region15: #{yolo_loss_forward.1} parent=5 // pred_region
      // Predicated region
      $region17: #{yolo_loss_forward.1} parent=15 // pred_check
        %p105 = pneg %p28
      $region18: #{yolo_loss_forward.1} parent=15 // pred_check_branch
        %107 = sbr.rel (%p105) target = $region20
      $region19: #{yolo_loss_forward.1} parent=15 // pred_region
        %p108 = scmp.lt.s32.totalorder %s8, 1
        %s109 = scalar_select %p108, %s8, 1
        %s110 = smul.addr %s109, 2
        %s111 = smul.addr %s110, 8
        %s112 = scalar_lea.vmem %s0, %s111
      $region20: #{yolo_loss_forward.1} parent=15 // pred_fallthru
        _
      // Predicated region
      $region21: #{yolo_loss_forward.1} parent=15 // pred_check
        %p113 = pneg %p54
      $region22: #{yolo_loss_forward.1} parent=15 // pred_check_branch
        %115 = sbr.rel (%p113) target = $region24
      $region23: #{yolo_loss_forward.1} parent=15 // pred_region
        %p116 = scmp.lt.s32.totalorder %s8, 1
        %s117 = scalar_select %p116, %s8, 1
        %s118 = smul.addr %s117, 2
        %s119 = smul.addr %s118, 8
        %s120 = scalar_lea.vmem %s1, %s119
      $region24: #{yolo_loss_forward.1} parent=15 // pred_fallthru
        _
    $region16: #{yolo_loss_forward.1} parent=5 // pred_fallthru
      _
    %p121 = scmp.le.s32.totalorder 1, %s8
    %p122 = scmp.lt.s32.totalorder %s8, 3
    %p123 = pnand %p121, %p122
    %p124 = pneg %p123
    // Predicated region
    $region25: #{yolo_loss_forward.1} parent=5 // pred_check
      _
    $region26: #{yolo_loss_forward.1} parent=5 // pred_check_branch
      %126 = sbr.rel (%p123) target = $region28
    $region27: #{yolo_loss_forward.1} parent=5 // pred_region
      %s127 = ssub.s32 %s8, 1
      %p128 = scmp.lt.s32.totalorder %s13, 1
      %s129 = scalar_select %p128, %s13, 1
      %s130 = smul.addr %s129, 2
      %s131 = smul.addr %s130, 8
      %s132 = scalar_lea.vmem %s0, %s131
      %p133 = pneg %p34
      %p134 = pneg %p31
      %p135 = scmp.lt.s32.totalorder %s13, 1
      %s136 = scalar_select %p135, %s13, 1
      %s137 = smul.addr %s136, 2
      %s138 = smul.addr %s137, 8
      %s139 = scalar_lea.vmem %s1, %s138
      %p140 = pneg %p60
      %p141 = pneg %p57
      %p142 = pneg %p86
      %p143 = pneg %p83
      %p144 = scmp.lt.s32.totalorder %s13, 1
      %s145 = scalar_select %p144, %s13, 1
      %s146 = smul.addr %s145, 8
      %s147 = scalar_lea.vmem %s2, %s146
      %p148 = scmp.lt.s32.totalorder %s13, 1
      %s149 = scalar_select %p148, %s13, 1
      %s150 = smul.addr %s149, 2
      %s151 = smul.addr %s150, 8
      %s152 = scalar_lea.vmem %s0, %s151
      %p153 = scmp.lt.s32.totalorder %s13, 1
      %s154 = scalar_select %p153, %s13, 1
      %s155 = smul.addr %s154, 2
      %s156 = smul.addr %s155, 8
      %s157 = scalar_lea.vmem %s1, %s156
      %p158 = scmp.lt.s32.totalorder %s13, 1
      %s159 = scalar_select %p158, %s13, 1
      %s160 = smul.addr %s159, 8
      %s161 = scalar_lea.vmem %s2, %s160
      %v162 = vld [vmem:[%s152] sm:$0xff]
      %v163 = vld [vmem:[%s152 + $0x8] sm:$0xff]
      %v164 = vld [vmem:[%s157] sm:$0xff]
      %v165 = vld [vmem:[%s157 + $0x8] sm:$0xff]
      %v166 = vlaneseq
      %v167 = vshrl.u32 %v166, 7
      %v168 = vlaneseq
      %v169 = vand.u32 %v168, 127
      %v170 = vadd.s32 %v169, 128
      %vm171 = vcmp.eq.s32.totalorder %v167, 2
      %vm172 = vcmp.eq.s32.totalorder %v167, 3
      %vm173 = vmor %vm171, %vm172
      %v174 = vsel %vm171, 1.9039433, 1.677051
      %v175 = vmul.f32 %v162, 0.5
      %v176 = vmul.f32 %v163, 0.5
      %v177 = vmul.f32 %v175, 1.442695
      %v178 = vpow.pop %v177
      %v179 = vmul.f32 %v176, 1.442695
      %v180 = vpow.pop %v179
      %v181 = vmul.f32 %v174, %v178
      %v182 = vmul.f32 %v174, %v180
      %v183 = vtanh.pop %v175
      %v184 = vtanh.pop %v176
      %v185 = vmul.f32 %v183, 0.5
      %v186 = vmul.f32 %v184, 0.5
      %v187 = vadd.f32 %v185, 0.5
      %v188 = vadd.f32 %v186, 0.5
      %v189 = vsel %vm173, %v181, %v187
      %v190 = vsel %vm173, %v182, %v188
      %v191 = vrsqrt.pop %v164
      %v192 = vmul.f32 %v164, %v191
      %vm193 = vcmp.eq.f32.partialorder %v164, inf
      %v194 = vsel %vm193, %v164, %v192
      %vm195 = vcmp.eq.f32.partialorder %v164, 0.0
      %v196 = vand.u32 %v164, 2147483648
      %v197 = vsel %vm195, %v196, %v194
      %v198 = vrsqrt.pop %v165
      %v199 = vmul.f32 %v165, %v198
      %vm200 = vcmp.eq.f32.partialorder %v165, inf
      %v201 = vsel %vm200, %v165, %v199
      %vm202 = vcmp.eq.f32.partialorder %v165, 0.0
      %v203 = vand.u32 %v165, 2147483648
      %v204 = vsel %vm202, %v203, %v201
      %v205 = vsel %vm173, %v197, %v164
      %v206 = vsel %vm173, %v204, %v165
      %v207 = vsub.f32 %v189, %v205
      %v208 = vsub.f32 %v190, %v206
      %v209 = vmul.f32 %v207, %v207
      %v210 = vmul.f32 %v208, %v208
      %vm211 = vcmp.lt.s32.totalorder %v167, 4
      %v212 = vsel %vm211, 5.0, 1.0
      %v213 = vmul.f32 %v212, %v209
      %v214 = vmul.f32 %v212, %v210
      %vm215 = vcmp.eq.s32.totalorder %v167, 4
      %v216 = vmul.f32 %v189, 0.5
      %v217 = vmul.f32 %v190, 0.5
      %v218 = vmul.f32 %v216, %v189
      %v219 = vmul.f32 %v217, %v190
      %v220 = vsel %vm215, %v218, 0.0
      %v221 = vsel %vm215, %v219, 0.0
      %vm222 = vcmp.gt.f32.partialorder %v164, 0.0
      %vm223 = vcmp.gt.f32.partialorder %v165, 0.0
      %v224 = vsel %vm222, 1, 0
      %v225 = vsel %vm223, 1, 0
      %v226 = vlaneseq
      %v227 = vshrl.u32 %v226, 7
      %v228 = vsub.s32 4, %v227
      %v229 = vrot.slane %v224, %v228
      %v230 = vlaneseq
      %v231 = vshrl.u32 %v230, 7
      %v232 = vsub.s32 4, %v231
      %v233 = vrot.slane %v225, %v232
      %vm234 = vcmp.eq.s32.totalorder %v229, 1
      %vm235 = vcmp.eq.s32.totalorder %v233, 1
      %v236 = vsel %vm234, %v213, %v220
      %v237 = vsel %vm235, %v214, %v221
      %vm238 = vcmp.lt.s32.totalorder %v167, 8
      %vm239 = vcmp.lt.s32.totalorder %v169, 169
      %vm240 = vcmp.lt.s32.totalorder %v170, 169
      %vm241 = vmand %vm238, %vm239
      %vm242 = vmand %vm238, %vm240
      %v243 = vsel %vm241, %v236, 0.0
      %v244 = vsel %vm242, %v237, 0.0
      %vm245 = vcmask 334848
      %v246 = vsel %vm245, %v244, 0.0
      %v247 = vadd.f32 %v243, %v246
      %248 = vadd.xlane.f32.xlu0 %v247
      %v249 = vpop.xlane.xlu0 %248
      %v250 = vrot.slane %v249, 4
      %v251 = vadd.f32 %v249, %v250
      %v252 = vrot.slane %v251, 2
      %v253 = vadd.f32 %v251, %v252
      %v254 = vrot.slane %v253, 1
      %v255 = vadd.f32 %v253, %v254
      %s256 = vtos %v255
      %v257 = vstv %s256
      %258 = vst [vmem:[%s161] sm:$0xff] %v257
      %p259 = scmp.lt.s32.totalorder %s13, 1
      %s260 = scalar_select %p259, %s13, 1
      %s261 = smul.addr %s260, 8
      %s262 = scalar_lea.vmem %s2, %s261
      // Predicated region
      $region29: #{yolo_loss_forward.1} parent=27 // pred_check
        %p263 = pneg %p83
      $region30: #{yolo_loss_forward.1} parent=27 // pred_check_branch
        %265 = sbr.rel (%p263) target = $region32
      $region31: #{yolo_loss_forward.1} parent=27 // pred_region
        _
      $region32: #{yolo_loss_forward.1} parent=27 // pred_fallthru
        _
    $region28: #{yolo_loss_forward.1} parent=5 // pred_fallthru
      _
    %p266 = scmp.le.s32.totalorder 2, %s8
    // Predicated region
    $region33: #{yolo_loss_forward.1} parent=5 // pred_check
      %p267 = pneg %p266
    $region34: #{yolo_loss_forward.1} parent=5 // pred_check_branch
      %269 = sbr.rel (%p267) target = $region36
    $region35: #{yolo_loss_forward.1} parent=5 // pred_region
      %s270 = ssub.s32 %s8, 2
      // Predicated region
      $region37: #{yolo_loss_forward.1} parent=35 // pred_check
        %p271 = pneg %p89
      $region38: #{yolo_loss_forward.1} parent=35 // pred_check_branch
        %273 = sbr.rel (%p271) target = $region40
      $region39: #{yolo_loss_forward.1} parent=35 // pred_region
        %p274 = scmp.lt.s32.totalorder %s14, 1
        %s275 = scalar_select %p274, %s14, 1
        %s276 = smul.addr %s275, 8
        %s277 = scalar_lea.vmem %s2, %s276
      $region40: #{yolo_loss_forward.1} parent=35 // pred_fallthru
        _
    $region36: #{yolo_loss_forward.1} parent=5 // pred_fallthru
      _
  $region6: #{yolo_loss_forward.1} parent=0 // loop_footer
    %s12 = sadd.s32 1, %s8
  $region7: #{yolo_loss_forward.1} parent=0 // loop_footer_branch
    %7 = sbr.rel target = $region3
  $region8: #{yolo_loss_forward.1} parent=0 // loop_exit
    _

</llo_original>
